<compile_context>
chip_gen: v5e
topology: v5e:2x2
jax: 0.10.0
libtpu: 0.0.40
codegen_flags: <defaults>
</compile_context>

<pallas_src>
import functools

import jax
import jax.numpy as jnp
from jax.experimental import pallas as pl
from jax.experimental.pallas import tpu as pltpu

_EPS = 1e-5


def _tnorm_kernel(x_ref, gamma_ref, beta_ref, red_ref, exp_ref,
                  out_ref, mean_ref, var_ref, *, inv_bt):
    # x_ref:              (B, C_TILE, N*T)  lane-dense channel tile
    # gamma_ref/beta_ref: (C_TILE, N)       per-tile blocks (no pl.ds needed)
    # red_ref:            (N*T, N)          block-diagonal ones (sum over T)
    # exp_ref:            (N, N*T)          its transpose (expand over T)
    # out_ref:            (B, C_TILE, N*T)
    # mean_ref/var_ref:   (C_TILE, N)       per-(channel, node) biased stats
    x = x_ref[...].astype(jnp.float32)

    # Reduce over batch first: plain VPU vreg adds, no cross-lane traffic.
    xs = jnp.sum(x, axis=0)                       # (C_TILE, N*T)
    xsq = jnp.sum(x * x, axis=0)                  # (C_TILE, N*T)

    # Reduce over time (lane groups of T) on the otherwise-idle MXU.
    red = red_ref[...]                            # (N*T, N)
    s1 = jnp.dot(xs, red, preferred_element_type=jnp.float32)    # (C_TILE, N)
    s2 = jnp.dot(xsq, red, preferred_element_type=jnp.float32)   # (C_TILE, N)

    mean = s1 * inv_bt
    # Single-pass (E[x^2] - mean^2) biased variance, clamped against
    # catastrophic cancellation.
    var = jnp.maximum(s2 * inv_bt - mean * mean, 0.0)
    inv = jax.lax.rsqrt(var + _EPS)

    scale = gamma_ref[...].astype(jnp.float32) * inv              # (C_TILE, N)
    shift = beta_ref[...].astype(jnp.float32) - mean * scale      # (C_TILE, N)

    # Expand per-(C, N) scale/shift back to N*T lanes via MXU.
    expd = exp_ref[...]                           # (N, N*T)
    scale_e = jnp.dot(scale, expd, preferred_element_type=jnp.float32)
    shift_e = jnp.dot(shift, expd, preferred_element_type=jnp.float32)

    # One FMA per element; full-width lane-dense store.
    out_ref[...] = (x * scale_e[None] + shift_e[None]).astype(out_ref.dtype)
    mean_ref[...] = mean
    var_ref[...] = var


def _choose_c_tile(B, C, NT, itemsize, budget_bytes):
    """Pick a channel tile whose pipelined blocks fit the VMEM budget."""
    nt_pad = pl.cdiv(NT, 128) * 128
    # in + out blocks, each double-buffered, plus ~2 f32 compute temporaries
    # of one block each (x cast + the scaled product).
    per_chan = (4 * itemsize + 2 * 4) * B * nt_pad
    max_c = max(1, int(budget_bytes // per_chan))
    total_x_bytes = B * C * nt_pad * itemsize

    # Small problem: a single block / grid step is the cheapest schedule.
    if max_c >= C and (total_x_bytes <= (4 << 20) or C < 32):
        return C

    # Aim for >= 4 grid steps so both v7x TensorCores get a pipelined pair
    # (no-op cost on single-core v5e/v6e).
    target = min(max_c, max(1, C // 4))

    best = 1
    for d in range(1, C + 1):
        # Keep the second-to-last block dim (8,128)-friendly.
        if C % d == 0 and d <= target and (d % 8 == 0 or d == C):
            best = d
    if best == 1:
        # Fallback: any divisor (may be layout-unaligned for awkward C).
        # TODO(synk): pad C to a multiple of 8 instead of shrinking the tile.
        for d in range(1, C + 1):
            if C % d == 0 and d <= target:
                best = d
    return best


@functools.partial(jax.jit, static_argnames=("momentum",))
def tnorm_forward(x, gamma, beta, running_mean, running_var, momentum=0.1):
    """Training-mode TNorm forward with track_running_stats=True.

    x:            (B, C, N, T) float32
    gamma, beta:  (1, C, N, 1) float32
    running_*:    (1, C, N, 1) float32
    Returns (out, new_running_mean, new_running_var).
    """
    B, C, N, T = x.shape
    NT = N * T
    itemsize = jnp.dtype(x.dtype).itemsize

    # Generation-aware VMEM sizing: 128 MiB on v5e/v6e, 64 MiB on v7x.
    try:
        vmem_cap = int(pltpu.get_tpu_info().vmem_capacity_bytes)
    except Exception:
        vmem_cap = 64 << 20          # conservative (v7x per-TensorCore VMEM)
    vmem_limit = int(min(vmem_cap * 3 // 4, 100 << 20))
    x_budget = int(vmem_limit * 6 // 10)

    c_tile = _choose_c_tile(B, C, NT, itemsize, x_budget)
    grid = (C // c_tile,)

    # Lane-dense view of x (contiguous trailing dims -> free reshape).
    x3 = x.reshape(B, C, NT)
    gamma_r = gamma.reshape(C, N).astype(jnp.float32)
    beta_r = beta.reshape(C, N).astype(jnp.float32)

    # Static block-diagonal ones matrix: red[r, c] = 1 iff r // T == c.
    row_node = jnp.arange(NT, dtype=jnp.int32) // T
    col_node = jnp.arange(N, dtype=jnp.int32)
    red = (row_node[:, None] == col_node[None, :]).astype(jnp.float32)  # (NT,N)
    expd = red.T                                                        # (N,NT)

    cost = pl.CostEstimate(
        flops=int(8 * B * C * NT),
        transcendentals=int(C * N),
        bytes_accessed=int(2 * B * C * NT * itemsize + 4 * C * N * 4),
    )

    out3, mean_cn, var_cn = pl.pallas_call(
        functools.partial(_tnorm_kernel, inv_bt=1.0 / float(B * T)),
        out_shape=(
            jax.ShapeDtypeStruct((B, C, NT), x.dtype),
            jax.ShapeDtypeStruct((C, N), jnp.float32),
            jax.ShapeDtypeStruct((C, N), jnp.float32),
        ),
        grid=grid,
        in_specs=[
            pl.BlockSpec((B, c_tile, NT), lambda c: (0, c, 0)),
            pl.BlockSpec((c_tile, N), lambda c: (c, 0)),
            pl.BlockSpec((c_tile, N), lambda c: (c, 0)),
            pl.BlockSpec((NT, N), lambda c: (0, 0)),   # resident, 1 DMA
            pl.BlockSpec((N, NT), lambda c: (0, 0)),   # resident, 1 DMA
        ],
        out_specs=(
            pl.BlockSpec((B, c_tile, NT), lambda c: (0, c, 0)),
            pl.BlockSpec((c_tile, N), lambda c: (c, 0)),
            pl.BlockSpec((c_tile, N), lambda c: (c, 0)),
        ),
        compiler_params=pltpu.CompilerParams(
            dimension_semantics=("parallel",),
            vmem_limit_bytes=vmem_limit,
        ),
        cost_estimate=cost,
    )(x3, gamma_r, beta_r, red, expd)

    out = out3.reshape(B, C, N, T)

    # Running-stat buffer update (torch.no_grad side effect) -- uses the stats
    # the kernel already computed; x is NOT re-read here.
    mean = mean_cn.reshape(1, C, N, 1)
    var = var_cn.reshape(1, C, N, 1)          # biased, exactly as in-kernel
    n = B * T
    # NOTE: PyTorch divides by zero when n == 1 (inf running_var); we guard
    # with bessel=1.0 instead, a deliberate (documented) divergence.
    bessel = float(n) / float(n - 1) if n > 1 else 1.0
    new_rm = momentum * mean + (1.0 - momentum) * running_mean
    new_rv = momentum * var * bessel + (1.0 - momentum) * running_var
    # TODO(synk): eval-mode branch (normalize with running buffers) and the
    # track_running_stats=False branch (per-sample unbiased var over axis 3)
    # are not routed through the kernel.
    return out, new_rm, new_rv


def _reference(x, gamma, beta, running_mean, running_var, momentum):
    mean = jnp.mean(x, axis=(0, 3), keepdims=True)
    var = jnp.var(x, axis=(0, 3), keepdims=True)     # biased
    out = (x - mean) / jnp.sqrt(var + _EPS) * gamma + beta
    n = x.shape[0] * x.shape[3]
    new_rm = momentum * mean + (1.0 - momentum) * running_mean
    new_rv = momentum * var * (n / (n - 1.0)) + (1.0 - momentum) * running_var
    return out, new_rm, new_rv


if __name__ == "__main__":
    B, C, N, T = 2, 4, 16, 8
    key = jax.random.PRNGKey(0)
    kx, kg, kb = jax.random.split(key, 3)
    x = jax.random.normal(kx, (B, C, N, T), dtype=jnp.float32)

    # Deterministic but non-trivial affine params (exercise the per-tile
    # gamma/beta blocks); running buffers match nn.Module __init__.
    gamma = 1.0 + 0.1 * jax.random.normal(kg, (1, C, N, 1), dtype=jnp.float32)
    beta = 0.1 * jax.random.normal(kb, (1, C, N, 1), dtype=jnp.float32)
    running_mean = jnp.zeros((1, C, N, 1), dtype=jnp.float32)
    running_var = jnp.ones((1, C, N, 1), dtype=jnp.float32)

    out, new_rm, new_rv = tnorm_forward(x, gamma, beta, running_mean,
                                        running_var, momentum=0.1)
    jax.block_until_ready((out, new_rm, new_rv))

    ref_out, ref_rm, ref_rv = _reference(x, gamma, beta, running_mean,
                                         running_var, 0.1)
    assert out.shape == x.shape
    assert jnp.allclose(out, ref_out, atol=1e-4, rtol=1e-4), "out mismatch"
    assert jnp.allclose(new_rm, ref_rm, atol=1e-5, rtol=1e-5), "rm mismatch"
    assert jnp.allclose(new_rv, ref_rv, atol=1e-5, rtol=1e-5), "rv mismatch"
    print("KERNEL_OK")
</pallas_src>

<mosaic_0001>
module attributes {stable_mosaic.version = 11 : i64} {
  func.func @_tnorm_kernel(%arg0: i32, %arg1: memref<2x4x128xf32, #tpu.memory_space<vmem>>, %arg2: memref<4x16xf32, #tpu.memory_space<vmem>>, %arg3: memref<4x16xf32, #tpu.memory_space<vmem>>, %arg4: memref<128x16xf32, #tpu.memory_space<vmem>>, %arg5: memref<16x128xf32, #tpu.memory_space<vmem>>, %arg6: memref<2x4x128xf32, #tpu.memory_space<vmem>>, %arg7: memref<4x16xf32, #tpu.memory_space<vmem>>, %arg8: memref<4x16xf32, #tpu.memory_space<vmem>>) attributes {dimension_semantics = [#tpu.dimension_semantics<parallel>], iteration_bounds = array<i64: 1>, scalar_prefetch = 0 : i64, scratch_operands = 0 : i64, tpu.core_type = #tpu.core_type<tc>, window_params = [{transform_indices = @transform_0, window_bounds = array<i64: 2, 4, 128>}, {transform_indices = @transform_1, window_bounds = array<i64: 4, 16>}, {transform_indices = @transform_2, window_bounds = array<i64: 4, 16>}, {pipeline_mode = #tpu.pipeline_mode<synchronous>, transform_indices = @transform_3, window_bounds = array<i64: 128, 16>}, {pipeline_mode = #tpu.pipeline_mode<synchronous>, transform_indices = @transform_4, window_bounds = array<i64: 16, 128>}, {transform_indices = @transform_5, window_bounds = array<i64: 2, 4, 128>}, {transform_indices = @transform_6, window_bounds = array<i64: 4, 16>}, {transform_indices = @transform_7, window_bounds = array<i64: 4, 16>}]} {
    %c0 = arith.constant 0 : index
    %c0_0 = arith.constant 0 : index
    %c0_1 = arith.constant 0 : index
    %0 = vector.load %arg1[%c0, %c0_0, %c0_1] : memref<2x4x128xf32, #tpu.memory_space<vmem>>, vector<2x4x128xf32>
    %cst = arith.constant dense<0.000000e+00> : vector<4x128xf32>
    %1 = vector.multi_reduction <add>, %0, %cst [0] : vector<2x4x128xf32> to vector<4x128xf32>
    %2 = arith.mulf %0, %0 : vector<2x4x128xf32>
    %cst_2 = arith.constant dense<0.000000e+00> : vector<4x128xf32>
    %3 = vector.multi_reduction <add>, %2, %cst_2 [0] : vector<2x4x128xf32> to vector<4x128xf32>
    %c0_3 = arith.constant 0 : index
    %c0_4 = arith.constant 0 : index
    %4 = vector.load %arg4[%c0_3, %c0_4] : memref<128x16xf32, #tpu.memory_space<vmem>>, vector<128x16xf32>
    %cst_5 = arith.constant dense<0.000000e+00> : vector<4x16xf32>
    %5 = tpu.matmul %1, %4, %cst_5 {dimension_numbers = #tpu.dot_dimension_numbers<[1], [0], [0], [1], [0, 0, 1, 1], [], []>} : vector<4x128xf32>, vector<128x16xf32>, vector<4x16xf32> -> vector<4x16xf32>
    %cst_6 = arith.constant dense<0.000000e+00> : vector<4x16xf32>
    %6 = tpu.matmul %3, %4, %cst_6 {dimension_numbers = #tpu.dot_dimension_numbers<[1], [0], [0], [1], [0, 0, 1, 1], [], []>} : vector<4x128xf32>, vector<128x16xf32>, vector<4x16xf32> -> vector<4x16xf32>
    %cst_7 = arith.constant 6.250000e-02 : f32
    %7 = vector.broadcast %cst_7 : f32 to vector<4x16xf32>
    %8 = arith.mulf %5, %7 : vector<4x16xf32>
    %cst_8 = arith.constant 6.250000e-02 : f32
    %9 = vector.broadcast %cst_8 : f32 to vector<4x16xf32>
    %10 = arith.mulf %6, %9 : vector<4x16xf32>
    %11 = arith.mulf %8, %8 : vector<4x16xf32>
    %12 = arith.subf %10, %11 : vector<4x16xf32>
    %cst_9 = arith.constant 0.000000e+00 : f32
    %13 = vector.broadcast %cst_9 : f32 to vector<4x16xf32>
    %14 = arith.maximumf %12, %13 : vector<4x16xf32>
    %cst_10 = arith.constant 9.99999974E-6 : f32
    %15 = vector.broadcast %cst_10 : f32 to vector<4x16xf32>
    %16 = arith.addf %14, %15 : vector<4x16xf32>
    %17 = math.rsqrt %16 : vector<4x16xf32>
    %c0_11 = arith.constant 0 : index
    %c0_12 = arith.constant 0 : index
    %18 = vector.load %arg2[%c0_11, %c0_12] : memref<4x16xf32, #tpu.memory_space<vmem>>, vector<4x16xf32>
    %19 = arith.mulf %18, %17 : vector<4x16xf32>
    %c0_13 = arith.constant 0 : index
    %c0_14 = arith.constant 0 : index
    %20 = vector.load %arg3[%c0_13, %c0_14] : memref<4x16xf32, #tpu.memory_space<vmem>>, vector<4x16xf32>
    %21 = arith.mulf %8, %19 : vector<4x16xf32>
    %22 = arith.subf %20, %21 : vector<4x16xf32>
    %c0_15 = arith.constant 0 : index
    %c0_16 = arith.constant 0 : index
    %23 = vector.load %arg5[%c0_15, %c0_16] : memref<16x128xf32, #tpu.memory_space<vmem>>, vector<16x128xf32>
    %cst_17 = arith.constant dense<0.000000e+00> : vector<4x128xf32>
    %24 = tpu.matmul %19, %23, %cst_17 {dimension_numbers = #tpu.dot_dimension_numbers<[1], [0], [0], [1], [0, 0, 1, 1], [], []>} : vector<4x16xf32>, vector<16x128xf32>, vector<4x128xf32> -> vector<4x128xf32>
    %cst_18 = arith.constant dense<0.000000e+00> : vector<4x128xf32>
    %25 = tpu.matmul %22, %23, %cst_18 {dimension_numbers = #tpu.dot_dimension_numbers<[1], [0], [0], [1], [0, 0, 1, 1], [], []>} : vector<4x16xf32>, vector<16x128xf32>, vector<4x128xf32> -> vector<4x128xf32>
    %26 = vector.shape_cast %24 : vector<4x128xf32> to vector<1x4x128xf32>
    %27 = vector.broadcast %26 : vector<1x4x128xf32> to vector<2x4x128xf32>
    %28 = arith.mulf %0, %27 : vector<2x4x128xf32>
    %29 = vector.shape_cast %25 : vector<4x128xf32> to vector<1x4x128xf32>
    %30 = vector.broadcast %29 : vector<1x4x128xf32> to vector<2x4x128xf32>
    %31 = arith.addf %28, %30 : vector<2x4x128xf32>
    %c0_19 = arith.constant 0 : index
    %c0_20 = arith.constant 0 : index
    %c0_21 = arith.constant 0 : index
    %32 = vector.load %arg6[%c0_19, %c0_20, %c0_21] : memref<2x4x128xf32, #tpu.memory_space<vmem>>, vector<2x4x128xf32>
    tpu.vector_store %arg6[%c0_19, %c0_20, %c0_21], %31 {strides = array<i32>} : memref<2x4x128xf32, #tpu.memory_space<vmem>>, vector<2x4x128xf32>,
    %c0_22 = arith.constant 0 : index
    %c0_23 = arith.constant 0 : index
    %33 = vector.load %arg7[%c0_22, %c0_23] : memref<4x16xf32, #tpu.memory_space<vmem>>, vector<4x16xf32>
    tpu.vector_store %arg7[%c0_22, %c0_23], %8 {strides = array<i32>} : memref<4x16xf32, #tpu.memory_space<vmem>>, vector<4x16xf32>,
    %c0_24 = arith.constant 0 : index
    %c0_25 = arith.constant 0 : index
    %34 = vector.load %arg8[%c0_24, %c0_25] : memref<4x16xf32, #tpu.memory_space<vmem>>, vector<4x16xf32>
    tpu.vector_store %arg8[%c0_24, %c0_25], %14 {strides = array<i32>} : memref<4x16xf32, #tpu.memory_space<vmem>>, vector<4x16xf32>,
    return
  }
  func.func @transform_0(%arg0: i32) -> (i32, i32, i32) {
    %c0_i32 = arith.constant 0 : i32
    %c0_i32_0 = arith.constant 0 : i32
    %c0_i32_1 = arith.constant 0 : i32
    return %c0_i32, %arg0, %c0_i32_0 : i32, i32, i32
  }
  func.func @transform_1(%arg0: i32) -> (i32, i32) {
    %c0_i32 = arith.constant 0 : i32
    %c0_i32_0 = arith.constant 0 : i32
    return %arg0, %c0_i32 : i32, i32
  }
  func.func @transform_2(%arg0: i32) -> (i32, i32) {
    %c0_i32 = arith.constant 0 : i32
    %c0_i32_0 = arith.constant 0 : i32
    return %arg0, %c0_i32 : i32, i32
  }
  func.func @transform_3(%arg0: i32) -> (i32, i32) {
    %c0_i32 = arith.constant 0 : i32
    %c0_i32_0 = arith.constant 0 : i32
    %c0_i32_1 = arith.constant 0 : i32
    return %c0_i32, %c0_i32_0 : i32, i32
  }
  func.func @transform_4(%arg0: i32) -> (i32, i32) {
    %c0_i32 = arith.constant 0 : i32
    %c0_i32_0 = arith.constant 0 : i32
    %c0_i32_1 = arith.constant 0 : i32
    return %c0_i32, %c0_i32_0 : i32, i32
  }
  func.func @transform_5(%arg0: i32) -> (i32, i32, i32) {
    %c0_i32 = arith.constant 0 : i32
    %c0_i32_0 = arith.constant 0 : i32
    %c0_i32_1 = arith.constant 0 : i32
    return %c0_i32, %arg0, %c0_i32_0 : i32, i32, i32
  }
  func.func @transform_6(%arg0: i32) -> (i32, i32) {
    %c0_i32 = arith.constant 0 : i32
    %c0_i32_0 = arith.constant 0 : i32
    return %arg0, %c0_i32 : i32, i32
  }
  func.func @transform_7(%arg0: i32) -> (i32, i32) {
    %c0_i32 = arith.constant 0 : i32
    %c0_i32_0 = arith.constant 0 : i32
    return %arg0, %c0_i32 : i32, i32
  }
}

</mosaic_0001>

<llo_original>
// kernel: tnorm_forward.1
$region0: #{tnorm_forward.1}
  #allocation0 [shape = 'u32[]', space=smem, size = 0x4, offset = 0x4, fixed_abs, tag = 'smem constant byte address 0x4 - core index']
  #allocation1 [shape = 'u32[72,128]{1,0:T(1,128)}', space=vmem, size = 0x9000, scoped, tag = 'internal scratch']
  %s0 = inlined_call_operand.vmem [shape: f32[2,4,128], index: 0, kind: input, shape index: {}]
  %s1 = inlined_call_operand.vmem [shape: f32[4,16], index: 1, kind: input, shape index: {}]
  %s2 = inlined_call_operand.vmem [shape: f32[4,16], index: 2, kind: input, shape index: {}]
  %s3 = inlined_call_operand.vmem [shape: f32[128,16], index: 3, kind: input, shape index: {}]
  %s4 = inlined_call_operand.vmem [shape: f32[16,128], index: 4, kind: input, shape index: {}]
  %s5 = inlined_call_operand.vmem [shape: f32[2,4,128], index: 5, kind: output, shape index: {0}]
  %s6 = inlined_call_operand.vmem [shape: f32[4,16], index: 6, kind: output, shape index: {1}]
  %s7 = inlined_call_operand.vmem [shape: f32[4,16], index: 7, kind: output, shape index: {2}]
  %8 = xla_tuple %s5, %s6, %s7
  %s9 = sld [smem:[#allocation0]]
  $region46: #{tnorm_forward.1} parent=0
    _
  %s11 = ssub.s32 1, %s9
  %s12 = scalar_select 0, %s11, %s9
  // Predicated region
  $region2: #{tnorm_forward.1} parent=0 // pred_check
    _
  $region3: #{tnorm_forward.1} parent=0 // pred_check_branch
    %14 = sbr.rel (0) target = $region5
  $region4: #{tnorm_forward.1} parent=0 // pred_region
    _
  $region5: #{tnorm_forward.1} parent=0 // pred_fallthru
    _
  // Predicated region
  $region6: #{tnorm_forward.1} parent=0 // pred_check
    _
  $region7: #{tnorm_forward.1} parent=0 // pred_check_branch
    %16 = sbr.rel (0) target = $region9
  $region8: #{tnorm_forward.1} parent=0 // pred_region
    _
  $region9: #{tnorm_forward.1} parent=0 // pred_fallthru
    _
  // Predicated region
  $region10: #{tnorm_forward.1} parent=0 // pred_check
    _
  $region11: #{tnorm_forward.1} parent=0 // pred_check_branch
    %18 = sbr.rel (0) target = $region13
  $region12: #{tnorm_forward.1} parent=0 // pred_region
    _
  $region13: #{tnorm_forward.1} parent=0 // pred_fallthru
    _
  // Predicated region
  $region14: #{tnorm_forward.1} parent=0 // pred_check
    _
  $region15: #{tnorm_forward.1} parent=0 // pred_check_branch
    %20 = sbr.rel (0) target = $region17
  $region16: #{tnorm_forward.1} parent=0 // pred_region
    _
  $region17: #{tnorm_forward.1} parent=0 // pred_fallthru
    _
  // Predicated region
  $region18: #{tnorm_forward.1} parent=0 // pred_check
    _
  $region19: #{tnorm_forward.1} parent=0 // pred_check_branch
    %22 = sbr.rel (0) target = $region21
  $region20: #{tnorm_forward.1} parent=0 // pred_region
    _
  $region21: #{tnorm_forward.1} parent=0 // pred_fallthru
    _
  %v23 = vld [vmem:[%s0] sm:$0xf]
  %v24 = vld [vmem:[%s0 + $0x4] sm:$0xf]
  %vm25 = vcmask 1043456
  %v26 = vsel %vm25, %v23, 0.0
  %v27 = vsel %vm25, %v24, 0.0
  %v28 = vadd.f32 %v26, %v27
  %v29 = vmul.f32 %v23, %v23
  %v30 = vmul.f32 %v24, %v24
  %v31 = vsel %vm25, %v29, 0.0
  %v32 = vsel %vm25, %v30, 0.0
  %v33 = vadd.f32 %v31, %v32
  %v34 = vld [vmem:[%s3] sm:$0xff]
  %v35 = vld [vmem:[%s3 + $0x8] sm:$0xff]
  %v36 = vld [vmem:[%s3 + $0x10] sm:$0xff]
  %v37 = vld [vmem:[%s3 + $0x18] sm:$0xff]
  %v38 = vld [vmem:[%s3 + $0x20] sm:$0xff]
  %v39 = vld [vmem:[%s3 + $0x28] sm:$0xff]
  %v40 = vld [vmem:[%s3 + $0x30] sm:$0xff]
  %v41 = vld [vmem:[%s3 + $0x38] sm:$0xff]
  %v42 = vld [vmem:[%s3 + $0x40] sm:$0xff]
  %v43 = vld [vmem:[%s3 + $0x48] sm:$0xff]
  %v44 = vld [vmem:[%s3 + $0x50] sm:$0xff]
  %v45 = vld [vmem:[%s3 + $0x58] sm:$0xff]
  %v46 = vld [vmem:[%s3 + $0x60] sm:$0xff]
  %v47 = vld [vmem:[%s3 + $0x68] sm:$0xff]
  %v48 = vld [vmem:[%s3 + $0x70] sm:$0xff]
  %v49 = vld [vmem:[%s3 + $0x78] sm:$0xff]
  %50 = vmatpush.msra.mxu0 %v49
  %51 = vmatpush.msra.mxu0 %v48
  %52 = vmatpush.msra.mxu0 %v47
  %53 = vmatpush.msra.mxu0 %v46
  %54 = vmatpush.msra.mxu0 %v45
  %55 = vmatpush.msra.mxu0 %v44
  %56 = vmatpush.msra.mxu0 %v43
  %57 = vmatpush.msra.mxu0 %v42
  %58 = vmatpush.msra.mxu0 %v41
  %59 = vmatpush.msra.mxu0 %v40
  %60 = vmatpush.msra.mxu0 %v39
  %61 = vmatpush.msra.mxu0 %v38
  %62 = vmatpush.msra.mxu0 %v37
  %63 = vmatpush.msra.mxu0 %v36
  %64 = vmatpush.msra.mxu0 %v35
  %65 = vmatpush.msra.mxu0 %v34
  %66 = vmatmul.f32.gmra.mxu0 %v28
  %v67 = vpop.f32.mrf.mxu0
  %v68 = vadd.f32 0.0, %v67
  %69 = vdwg.mxu0
  %70 = vmatpush.msra.mxu0 %v49
  %71 = vmatpush.msra.mxu0 %v48
  %72 = vmatpush.msra.mxu0 %v47
  %73 = vmatpush.msra.mxu0 %v46
  %74 = vmatpush.msra.mxu0 %v45
  %75 = vmatpush.msra.mxu0 %v44
  %76 = vmatpush.msra.mxu0 %v43
  %77 = vmatpush.msra.mxu0 %v42
  %78 = vmatpush.msra.mxu0 %v41
  %79 = vmatpush.msra.mxu0 %v40
  %80 = vmatpush.msra.mxu0 %v39
  %81 = vmatpush.msra.mxu0 %v38
  %82 = vmatpush.msra.mxu0 %v37
  %83 = vmatpush.msra.mxu0 %v36
  %84 = vmatpush.msra.mxu0 %v35
  %85 = vmatpush.msra.mxu0 %v34
  %86 = vmatmul.f32.gmra.mxu0 %v33
  %v87 = vpop.f32.mrf.mxu0
  %v88 = vadd.f32 0.0, %v87
  %89 = vdwg.mxu0
  %v90 = vmul.f32 %v68, 0.0625
  %v91 = vmul.f32 %v88, 0.0625
  %v92 = vmul.f32 %v90, %v90
  %v93 = vsub.f32 %v91, %v92
  %v94 = vmax.f32 %v93, 0.0
  %v95 = vadd.f32 %v94, 1e-05
  %v96 = vrsqrt.pop %v95
  %v97 = vmul.f32 %v96, %v95
  %v98 = vmul.f32 %v97, %v96
  %v99 = vmul.f32 0.5, %v98
  %v100 = vsub.f32 1.5, %v99
  %v101 = vmul.f32 %v96, %v100
  %vm102 = vweird.f32 %v95
  %vm103 = vweird.f32 %v96
  %vm104 = vmor %vm102, %vm103
  %v105 = vsel %vm104, %v96, %v101
  %v106 = vld [vmem:[%s1] sm:$0xf]
  %v107 = vmul.f32 %v106, %v105
  %v108 = vld [vmem:[%s2] sm:$0xf]
  %v109 = vmul.f32 %v90, %v107
  %v110 = vsub.f32 %v108, %v109
  %v111 = vld [vmem:[%s4] sm:$0xff]
  %v112 = vld [vmem:[%s4 + $0x8] sm:$0xff]
  %vm113 = vcmask 130048
  %v115 = vsel %vm113, %v107, 0
  %117 = vmatpush.msra.mxu0 0.0
  %118 = vmatpush.msra.mxu0 0.0
  %119 = vmatpush.msra.mxu0 0.0
  %120 = vmatpush.msra.mxu0 0.0
  %121 = vmatpush.msra.mxu0 0.0
  %122 = vmatpush.msra.mxu0 0.0
  %123 = vmatpush.msra.mxu0 0.0
  %124 = vmatpush.msra.mxu0 0.0
  %125 = vmatpush.msra.mxu0 0.0
  %126 = vmatpush.msra.mxu0 0.0
  %127 = vmatpush.msra.mxu0 0.0
  %128 = vmatpush.msra.mxu0 0.0
  %129 = vmatpush.msra.mxu0 0.0
  %130 = vmatpush.msra.mxu0 0.0
  %131 = vmatpush.msra.mxu0 %v112
  %132 = vmatpush.msra.mxu0 %v111
  %133 = vmatmul.f32.gmra.mxu0 %v115
  %v134 = vpop.f32.mrf.mxu0
  %v135 = vadd.f32 0.0, %v134
  %136 = vdwg.mxu0
  %v138 = vsel %vm113, %v110, 0
  %140 = vmatpush.msra.mxu0 0.0
  %141 = vmatpush.msra.mxu0 0.0
  %142 = vmatpush.msra.mxu0 0.0
  %143 = vmatpush.msra.mxu0 0.0
  %144 = vmatpush.msra.mxu0 0.0
  %145 = vmatpush.msra.mxu0 0.0
  %146 = vmatpush.msra.mxu0 0.0
  %147 = vmatpush.msra.mxu0 0.0
  %148 = vmatpush.msra.mxu0 0.0
  %149 = vmatpush.msra.mxu0 0.0
  %150 = vmatpush.msra.mxu0 0.0
  %151 = vmatpush.msra.mxu0 0.0
  %152 = vmatpush.msra.mxu0 0.0
  %153 = vmatpush.msra.mxu0 0.0
  %154 = vmatpush.msra.mxu0 %v112
  %155 = vmatpush.msra.mxu0 %v111
  %156 = vmatmul.f32.gmra.mxu0 %v138
  %v157 = vpop.f32.mrf.mxu0
  %v158 = vadd.f32 0.0, %v157
  %159 = vdwg.mxu0
  %v160 = vmul.f32 %v23, %v135
  %v161 = vmul.f32 %v24, %v135
  %v162 = vadd.f32 %v160, %v158
  %v163 = vadd.f32 %v161, %v158
  %164 = vst [vmem:[%s5] sm:$0xf] %v162
  %165 = vst [vmem:[%s5 + $0x4] sm:$0xf] %v163
  %vm166 = vcmask 125952
  %167 = vst.msk [vmem:[%s6] sm:$0xf] %vm166, %v90
  %168 = vst.msk [vmem:[%s7] sm:$0xf] %vm166, %v94
  // Predicated region
  $region22: #{tnorm_forward.1} parent=0 // pred_check
    _
  $region23: #{tnorm_forward.1} parent=0 // pred_check_branch
    %170 = sbr.rel (0) target = $region25
  $region24: #{tnorm_forward.1} parent=0 // pred_region
    _
  $region25: #{tnorm_forward.1} parent=0 // pred_fallthru
    _
  // Predicated region
  $region26: #{tnorm_forward.1} parent=0 // pred_check
    _
  $region27: #{tnorm_forward.1} parent=0 // pred_check_branch
    %172 = sbr.rel (0) target = $region29
  $region28: #{tnorm_forward.1} parent=0 // pred_region
    _
  $region29: #{tnorm_forward.1} parent=0 // pred_fallthru
    _
  // Predicated region
  $region30: #{tnorm_forward.1} parent=0 // pred_check
    _
  $region31: #{tnorm_forward.1} parent=0 // pred_check_branch
    %174 = sbr.rel (0) target = $region33
  $region32: #{tnorm_forward.1} parent=0 // pred_region
    _
  $region33: #{tnorm_forward.1} parent=0 // pred_fallthru
    _
  // Predicated region
  $region34: #{tnorm_forward.1} parent=0 // pred_check
    _
  $region35: #{tnorm_forward.1} parent=0 // pred_check_branch
    %176 = sbr.rel (0) target = $region37
  $region36: #{tnorm_forward.1} parent=0 // pred_region
    _
  $region37: #{tnorm_forward.1} parent=0 // pred_fallthru
    _
  // Predicated region
  $region38: #{tnorm_forward.1} parent=0 // pred_check
    _
  $region39: #{tnorm_forward.1} parent=0 // pred_check_branch
    %178 = sbr.rel (0) target = $region41
  $region40: #{tnorm_forward.1} parent=0 // pred_region
    _
  $region41: #{tnorm_forward.1} parent=0 // pred_fallthru
    _
  // Predicated region
  $region42: #{tnorm_forward.1} parent=0 // pred_check
    _
  $region43: #{tnorm_forward.1} parent=0 // pred_check_branch
    %180 = sbr.rel (0) target = $region45
  $region44: #{tnorm_forward.1} parent=0 // pred_region
    _
  $region45: #{tnorm_forward.1} parent=0 // pred_fallthru
    _

</llo_original>
